<compile_context>
chip_gen: v7x
topology: tpu7x:2x2x1
jax: 0.10.0
libtpu: 0.0.40
codegen_flags: <defaults>
</compile_context>

<pallas_src>
import functools

import jax
import jax.numpy as jnp
from jax import lax
from jax.experimental import pallas as pl
from jax.experimental.pallas import tpu as pltpu


NUM_BLOCKS = 3            # ResidualBlocksWithInputConv(num_blocks=3)
DECONV_K = 5              # ConvTranspose2d kernel size
MXU_DTYPE = jnp.bfloat16  # MXU input dtype (accumulation stays f32)
DECONV_ROWS = 16          # 4 phases x 3 channels, padded to 16 sublanes
TAP_OFFSETS = tuple((dy, dx) for dy in (-1, 0, 1) for dx in (-1, 0, 1))


# ---------------------------------------------------------------------------
# ConvTranspose2d(k=5, stride=2, pad=2, output_pad=1) sub-pixel phase taps
# ---------------------------------------------------------------------------
def _deconv_taps(parity):
    """(spatial offset, kernel index) pairs along one axis for output parity r."""
    taps = [(+1, parity), (0, parity + 2)]
    if parity == 0:
        taps.append((-1, parity + 4))
    return taps


# ---------------------------------------------------------------------------
# One-time probe of pltpu.roll's rotation direction (expected: jnp.roll
# semantics).  Makes the static tap shifts robust to either convention.
# ---------------------------------------------------------------------------
def _roll_probe_kernel(x_ref, o_ref):
    o_ref[...] = pltpu.roll(x_ref[...], 3, axis=1)


@functools.lru_cache(maxsize=None)
def _roll_matches_jnp():
    x = jnp.arange(8 * 128, dtype=jnp.float32).reshape(8, 128)
    y = pl.pallas_call(
        _roll_probe_kernel,
        out_shape=jax.ShapeDtypeStruct((8, 128), jnp.float32),
    )(x)
    return bool(jnp.array_equal(y, jnp.roll(x, 3, axis=1)))


def _tensorcores_per_device():
    """Best-effort: 1 for single-TC chips (v5e/v6e), else 2 (megacore / v7x)."""
    try:
        kind = jax.devices()[0].device_kind.lower()
    except Exception:
        return 1
    single_tc = ("v5e", "v5 lite", "v5lite", "v6e", "v6 lite", "v6lite")
    return 1 if any(s in kind for s in single_tc) else 2


# ---------------------------------------------------------------------------
# Fused head kernel: input conv + 3 residual blocks + fused 4-phase deconv
# ---------------------------------------------------------------------------
def _make_head_kernel(h, w, c_mid, lanes, roll_like_jnp):
    c = c_mid

    def kernel(x_ref, mask_ref, wc_ref, bc_ref, wd_ref, bd_ref, o_ref,
               patches_ref):

        def im2col(feat_bf):
            """feat_bf (C, L) bf16 -> fill the (9C, L) bf16 scratch tap-by-tap."""
            for t, (dy, dx) in enumerate(TAP_OFFSETS):
                if dy == 0 and dx == 0:
                    patches_ref[pl.ds(t * c, c), :] = feat_bf
                else:
                    d = dy * w + dx
                    shift = (-d) % lanes if roll_like_jnp else d % lanes
                    shifted = pltpu.roll(feat_bf, shift, axis=1)        # XLU
                    patches_ref[pl.ds(t * c, c), :] = (
                        shifted * mask_ref[pl.ds(t, 1), :])             # bf16 VPU

        def conv3x3(feat_bf, idx, act):
            im2col(feat_bf)
            out = jnp.dot(wc_ref[idx], patches_ref[...],
                          preferred_element_type=jnp.float32)           # (C, L) f32
            out = out + bc_ref[idx]                                     # (C, 1)
            if act == "lrelu":
                out = jnp.where(out >= 0.0, out, 0.1 * out)
            elif act == "relu":
                out = jnp.maximum(out, 0.0)
            return out

        # ---- ResidualBlocksWithInputConv ---------------------------------
        feat = conv3x3(x_ref[0], 0, "lrelu")                            # f32
        for i in range(NUM_BLOCKS):
            mid = conv3x3(feat.astype(MXU_DTYPE), 1 + 2 * i, "relu")
            feat = feat + conv3x3(mid.astype(MXU_DTYPE), 2 + 2 * i, None)

        # ---- ConvTranspose2d: 4 sub-pixel phases fused into ONE matmul ----
        im2col(feat.astype(MXU_DTYPE))
        dec = jnp.dot(wd_ref[...], patches_ref[...],
                      preferred_element_type=jnp.float32)               # (16, L)
        o_ref[0] = (dec + bd_ref[...]).astype(o_ref.dtype)              # wide store

    return kernel


# ---------------------------------------------------------------------------
# Weight packing (wrapper side; tap ordering matches TAP_OFFSETS / im2col)
# ---------------------------------------------------------------------------
def _pack_conv3x3_weight(w_hwio, c_in_pad):
    """HWIO (3,3,Cin,Cout) -> (Cout, 9*Cin_pad) bf16, taps (dy,dx) row-major."""
    k, _, c_in, c_out = w_hwio.shape
    if c_in_pad != c_in:
        w_hwio = jnp.pad(w_hwio, ((0, 0), (0, 0), (0, c_in_pad - c_in), (0, 0)))
    return jnp.transpose(w_hwio.reshape(k * k * c_in_pad, c_out)).astype(MXU_DTYPE)


def _pack_deconv_fused_weight(w_pt, c_mid):
    """PyTorch ConvTranspose2d weight (Cin,3,5,5) -> fused (16, 9*Cin) bf16.

    Row 3*(2*ry+rx)+co holds phase (ry,rx), output channel co; tap columns a
    phase does not use stay zero so all 4 phases share one 9-tap im2col.
    """
    w = jnp.zeros((DECONV_ROWS, 9 * c_mid), jnp.float32)
    for ry in (0, 1):
        ky_of = {dy: ky for dy, ky in _deconv_taps(ry)}
        for rx in (0, 1):
            kx_of = {dx: kx for dx, kx in _deconv_taps(rx)}
            p = 2 * ry + rx
            for t, (dy, dx) in enumerate(TAP_OFFSETS):
                if dy in ky_of and dx in kx_of:
                    blk = jnp.transpose(w_pt[:, :, ky_of[dy], kx_of[dx]])  # (3,Cin)
                    w = w.at[3 * p:3 * p + 3,
                             t * c_mid:(t + 1) * c_mid].set(blk)
    return w.astype(MXU_DTYPE)


# ---------------------------------------------------------------------------
# Public forward: NCHW features -> NCHW reconstruction (N, 3, 2H, 2W)
# ---------------------------------------------------------------------------
def compression_reconstruction_head(features_nchw, params):
    n = features_nchw.shape[0]
    groups = min(n, _tensorcores_per_device())
    if n % groups != 0:
        groups = 1
    return _head_fwd(features_nchw, params, _roll_matches_jnp(), groups)


@functools.partial(jax.jit, static_argnums=(2, 3))
def _head_fwd(features_nchw, params, roll_like_jnp, num_groups):
    n, c_in, h, w = features_nchw.shape
    hw = h * w
    gsz = n // num_groups
    lanes = gsz * hw
    c_mid = params["w_in"].shape[-1]
    n_conv = 1 + 2 * NUM_BLOCKS
    assert lanes % 128 == 0, "frames_per_step * H * W must be a multiple of 128"
    assert c_mid % 8 == 0, "mid_channels must be a multiple of 8"
    # TODO(synk): in_channels > mid_channels would need a separate first-conv
    # weight slab (different contraction depth); not needed for this head.
    assert c_in <= c_mid

    # activations: channels on sublanes, (frames-in-group, H*W) folded on lanes
    x = features_nchw.reshape(num_groups, gsz, c_in, hw)
    x = jnp.transpose(x, (0, 2, 1, 3)).reshape(num_groups, c_in, lanes)
    x = jnp.pad(x, ((0, 0), (0, c_mid - c_in), (0, 0))).astype(MXU_DTYPE)

    # per-tap validity masks with per-frame coordinates (no cross-frame leak)
    pos = jnp.arange(lanes, dtype=jnp.int32) % hw
    py, px = pos // w, pos % w
    masks = jnp.stack(
        [((py + dy >= 0) & (py + dy < h) & (px + dx >= 0) & (px + dx < w))
         for dy, dx in TAP_OFFSETS]).astype(MXU_DTYPE)                 # (9, L)

    # packed weight / bias slabs (few, large inputs)
    w_conv = jnp.stack(
        [_pack_conv3x3_weight(params["w_in"], c_mid)]
        + [_pack_conv3x3_weight(params[f"w{j}_{i}"], c_mid)
           for i in range(NUM_BLOCKS) for j in (1, 2)])                # (7,C,9C)
    b_conv = jnp.stack(
        [params["b_in"]]
        + [params[f"b{j}_{i}"] for i in range(NUM_BLOCKS) for j in (1, 2)]
    ).reshape(n_conv, c_mid, 1).astype(jnp.float32)
    w_dec = _pack_deconv_fused_weight(params["w_deconv_pt"], c_mid)    # (16,9C)
    b_dec = jnp.pad(jnp.tile(params["b_deconv"], 4),
                    (0, DECONV_ROWS - 12)).reshape(DECONV_ROWS, 1).astype(jnp.float32)

    out16 = pl.pallas_call(
        _make_head_kernel(h, w, c_mid, lanes, roll_like_jnp),
        out_shape=jax.ShapeDtypeStruct((num_groups, DECONV_ROWS, lanes),
                                       jnp.float32),
        grid=(num_groups,),
        in_specs=[
            pl.BlockSpec((1, c_mid, lanes), lambda i: (i, 0, 0)),
            pl.BlockSpec((9, lanes), lambda i: (0, 0)),
            pl.BlockSpec((n_conv, c_mid, 9 * c_mid), lambda i: (0, 0, 0)),
            pl.BlockSpec((n_conv, c_mid, 1), lambda i: (0, 0, 0)),
            pl.BlockSpec((DECONV_ROWS, 9 * c_mid), lambda i: (0, 0)),
            pl.BlockSpec((DECONV_ROWS, 1), lambda i: (0, 0)),
        ],
        out_specs=pl.BlockSpec((1, DECONV_ROWS, lanes), lambda i: (i, 0, 0)),
        scratch_shapes=[pltpu.VMEM((9 * c_mid, lanes), MXU_DTYPE)],
        compiler_params=pltpu.CompilerParams(
            dimension_semantics=("parallel",)),
    )(x, masks, w_conv, b_conv, w_dec, b_dec)

    # sub-pixel shuffle of the 4 deconv phases -> NCHW (layout plumbing only)
    out = out16[:, :12, :].reshape(num_groups, 2, 2, 3, gsz, h, w)
    out = jnp.transpose(out, (0, 4, 3, 5, 1, 6, 2))      # (G, g, c, h, ry, w, rx)
    return out.reshape(n, 3, 2 * h, 2 * w)


# ---------------------------------------------------------------------------
# Pure-JAX references (lax convs) for validation
# ---------------------------------------------------------------------------
def _ref_forward(features_nchw, params, mxu_dtype=jnp.float32):
    dn = ("NHWC", "HWIO", "NHWC")
    prec = lax.Precision.HIGHEST if mxu_dtype == jnp.float32 else None

    def conv(x, w_hwio, padding, lhs_dilation=(1, 1)):
        return lax.conv_general_dilated(
            x.astype(mxu_dtype), w_hwio.astype(mxu_dtype), (1, 1), padding,
            lhs_dilation=lhs_dilation, dimension_numbers=dn,
            precision=prec, preferred_element_type=jnp.float32)

    x = jnp.transpose(features_nchw, (0, 2, 3, 1)).astype(jnp.float32)
    feat = conv(x, params["w_in"], "SAME") + params["b_in"]
    feat = jnp.where(feat >= 0, feat, 0.1 * feat)
    for i in range(NUM_BLOCKS):
        mid = jnp.maximum(conv(feat, params[f"w1_{i}"], "SAME") + params[f"b1_{i}"], 0.0)
        feat = feat + (conv(mid, params[f"w2_{i}"], "SAME") + params[f"b2_{i}"])

    # ConvTranspose2d(mid,3,5,s=2,p=2,op=1) == lhs-dilated conv, flipped kernel
    w_dec = jnp.transpose(jnp.flip(params["w_deconv_pt"], axis=(2, 3)), (2, 3, 0, 1))
    out = conv(feat, w_dec, ((2, 3), (2, 3)), lhs_dilation=(2, 2)) + params["b_deconv"]
    return jnp.transpose(out, (0, 3, 1, 2))


# ---------------------------------------------------------------------------
# Deterministic synthetic parameters (no checkpoint loading)
# ---------------------------------------------------------------------------
def init_params(key, in_channels, mid_channels):
    keys = jax.random.split(key, 24)

    def rnd(k, shape, scale):
        return scale * jax.random.normal(k, shape, jnp.float32)

    p = {"w_in": rnd(keys[0], (3, 3, in_channels, mid_channels), 0.1),
         "b_in": rnd(keys[1], (mid_channels,), 0.1)}
    for i in range(NUM_BLOCKS):
        p[f"w1_{i}"] = rnd(keys[2 + 4 * i], (3, 3, mid_channels, mid_channels), 0.05)
        p[f"b1_{i}"] = rnd(keys[3 + 4 * i], (mid_channels,), 0.05)
        p[f"w2_{i}"] = rnd(keys[4 + 4 * i], (3, 3, mid_channels, mid_channels), 0.05)
        p[f"b2_{i}"] = rnd(keys[5 + 4 * i], (mid_channels,), 0.05)
    # PyTorch ConvTranspose2d weight layout: (in_channels, out_channels, kH, kW)
    p["w_deconv_pt"] = rnd(keys[20], (mid_channels, 3, DECONV_K, DECONV_K), 0.05)
    p["b_deconv"] = rnd(keys[21], (3,), 0.05)
    return p


if __name__ == "__main__":
    key = jax.random.PRNGKey(0)
    N, C_IN, C_MID, H, W = 2, 4, 16, 16, 16

    pkey, xkey = jax.random.split(key)
    params = init_params(pkey, C_IN, C_MID)
    features = jax.random.normal(xkey, (N, C_IN, H, W), jnp.float32)   # NCHW

    out = jax.block_until_ready(compression_reconstruction_head(features, params))
    assert out.shape == (N, 3, 2 * H, 2 * W), out.shape
    assert bool(jnp.all(jnp.isfinite(out)))

    # Structural check: reference using the same bf16-MXU / f32-accumulate math.
    ref_bf16 = jax.block_until_ready(_ref_forward(features, params, jnp.bfloat16))
    err_b = float(jnp.max(jnp.abs(out - ref_bf16)))
    assert jnp.allclose(out, ref_bf16, atol=5e-3, rtol=5e-3), err_b

    # Sanity vs. full-f32 reference (bf16 MXU inputs => looser tolerance).
    ref_f32 = jax.block_until_ready(_ref_forward(features, params, jnp.float32))
    err_f = float(jnp.max(jnp.abs(out - ref_f32)))
    assert jnp.allclose(out, ref_f32, atol=3e-2, rtol=3e-2), err_f

    print("KERNEL_OK")
</pallas_src>

<mosaic_0001>
module attributes {stable_mosaic.version = 11 : i64} {
  func.func @_roll_probe_kernel(%arg0: memref<8x128xf32, #tpu.memory_space<vmem>>, %arg1: memref<8x128xf32, #tpu.memory_space<vmem>>) attributes {dimension_semantics = [], scalar_prefetch = 0 : i64, scratch_operands = 0 : i64, tpu.core_type = #tpu.core_type<tc>} {
    %c0 = arith.constant 0 : index
    %c0_0 = arith.constant 0 : index
    %0 = vector.load %arg0[%c0, %c0_0] : memref<8x128xf32, #tpu.memory_space<vmem>>, vector<8x128xf32>
    %c3_i32 = arith.constant 3 : i32
    %1 = tpu.dynamic_rotate %0 by %c3_i32 dim 1 : vector<8x128xf32>, i32 -> vector<8x128xf32>
    %c0_1 = arith.constant 0 : index
    %c0_2 = arith.constant 0 : index
    %2 = vector.load %arg1[%c0_1, %c0_2] : memref<8x128xf32, #tpu.memory_space<vmem>>, vector<8x128xf32>
    tpu.vector_store %arg1[%c0_1, %c0_2], %1 {strides = array<i32>} : memref<8x128xf32, #tpu.memory_space<vmem>>, vector<8x128xf32>,
    return
  }
}

</mosaic_0001>

<llo_original>
// kernel: tpu_custom_call.1
$region0: #{tpu_custom_call.1}
  #allocation0 [shape = 'u32[]', space=smem, size = 0x4, offset = 0x4, fixed_abs, tag = 'smem constant byte address 0x4 - core index']
  #allocation1 [shape = 'u32[144,128]{1,0:T(1,128)}', space=vmem, size = 0x12000, scoped, tag = 'internal scratch']
  %s0 = inlined_call_operand.hbm [shape: f32[8,128], index: 0, kind: input, shape index: {}]
  %s1 = inlined_call_operand.hbm [shape: f32[8,128], index: 1, kind: output, shape index: {}]
  %s2 = sld [smem:[#allocation0]]
  $region18: #{tpu_custom_call.1} parent=0
    _
  %s4 = ssub.s32 1, %s2
  %s5 = scalar_select 0, %s4, %s2
  $region1: #{tpu_custom_call.1} parent=0
    #allocation2 [shape = 'u8[4096]{0}', space=vmem, size = 0x1000, scoped, tag = 'input window, operand 0, single buffered']
    #allocation3 [shape = 's32[1]{0}', space=sflag, size = 0x4, scoped, tag = 'scoped memory for tpu_custom_call.1']
    #allocation4 [shape = 's32[1]{0}', space=sflag, size = 0x4, scoped, tag = 'scoped memory for tpu_custom_call.1']
    #allocation5 [shape = 'u8[4096]{0}', space=vmem, size = 0x1000, scoped, tag = 'output window, operand 0, single buffered']
    %6 = vsyncpa [#allocation3], 0
    %7 = vsyncpa [#allocation4], 0
    // Predicated region
    $region2: #{tpu_custom_call.1} parent=1 // pred_check
      _
    $region3: #{tpu_custom_call.1} parent=1 // pred_check_branch
      %9 = sbr.rel (0) target = $region5
    $region4: #{tpu_custom_call.1} parent=1 // pred_region
      %s11 = ssub.s32 128, 128
      %12 = vsyncadd [#allocation3], %s11
      %s14 = sshll.u32 [#allocation2], 4
      %s15 = int_to_ptr.vmem [resolvable:$true] %s14
      %17 = dma.hbm_to_vmem [thread:$0]  %s0, 128, %s15, [#allocation3]
    $region5: #{tpu_custom_call.1} parent=1 // pred_fallthru
      _
    // Predicated region
    $region6: #{tpu_custom_call.1} parent=1 // pred_check
      _
    $region7: #{tpu_custom_call.1} parent=1 // pred_check_branch
      %19 = sbr.rel (0) target = $region9
    $region8: #{tpu_custom_call.1} parent=1 // pred_region
      %20 = dma.done [#allocation3], 128
    $region9: #{tpu_custom_call.1} parent=1 // pred_fallthru
      _
    %v21 = vld [vmem:[#allocation2] sm:$0xff]
    %22 = vrot.lane.b32.xlu0 %v21, 3
    %v23 = vpop.permute.xlu0 %22
    %24 = vst [vmem:[#allocation5] sm:$0xff] %v23
    // Predicated region
    $region10: #{tpu_custom_call.1} parent=1 // pred_check
      _
    $region11: #{tpu_custom_call.1} parent=1 // pred_check_branch
      %26 = sbr.rel (0) target = $region13
    $region12: #{tpu_custom_call.1} parent=1 // pred_region
      %s28 = ssub.s32 128, 128
      %29 = vsyncadd [#allocation4], %s28
      %s31 = sshll.u32 [#allocation5], 4
      %s32 = int_to_ptr.vmem [resolvable:$true] %s31
      %34 = dma.vmem_to_hbm [thread:$0]  %s32, 128, %s1, [#allocation4]
    $region13: #{tpu_custom_call.1} parent=1 // pred_fallthru
      _
    // Predicated region
    $region14: #{tpu_custom_call.1} parent=1 // pred_check
      _
    $region15: #{tpu_custom_call.1} parent=1 // pred_check_branch
      %36 = sbr.rel (0) target = $region17
    $region16: #{tpu_custom_call.1} parent=1 // pred_region
      %37 = dma.done [#allocation4], 128
    $region17: #{tpu_custom_call.1} parent=1 // pred_fallthru
      _
    %38 = vsyncpa [#allocation3], 1
    %39 = vsyncpa [#allocation4], 1

</llo_original>
